<compile_context>
chip_gen: v5e
topology: v5e:2x2
jax: 0.10.0
libtpu: 0.0.40
codegen_flags: <defaults>
</compile_context>

<pallas_src>
import functools
import math

import jax
import jax.numpy as jnp
from jax.experimental import pallas as pl
from jax.experimental.pallas import tpu as pltpu


def _norm_kernel(s_ref, o_ref, *, alpha):
    """softmax(alpha * s) over the last (lane) axis of the current (tR, D) block."""
    # Promote to f32 before scaling/subtracting: with alpha=200 a bf16 subtract
    # would inject O(0.1..1) error into the exp argument. The extra casts / the
    # full-tile multiply are hidden under HBM DMA (kernel is memory-bound), and
    # taking the max of the already-scaled values is correct for any sign of alpha.
    y = alpha * s_ref[...].astype(jnp.float32)
    m = jnp.max(y, axis=-1, keepdims=True)
    e = jnp.exp(y - m)
    denom = jnp.sum(e, axis=-1, keepdims=True)
    # Exact division so rows sum to 1.0; cost is hidden under the HBM roofline.
    o_ref[...] = (e / denom).astype(o_ref.dtype)


def _pick_tile_rows(R, D, itemsize, row_mult, *, target_bytes=4 << 20, min_steps=4):
    """Rows per block: <= ~target_bytes per tile, >= min_steps grid steps when possible.

    4 MiB tiles => double-buffered in+out ~16 MiB scoped VMEM, which fits the
    explicit 32 MiB limit we request on every generation (v5e/v6e/v7x).
    """
    bytes_per_row = max(1, D * itemsize)
    # Largest row-multiple whose (tR, D) tile stays under ~target_bytes.
    t_bytes = max(row_mult, (target_bytes // bytes_per_row) // row_mult * row_mult)
    # Prefer at least `min_steps` grid steps so input prefetch / output writeback
    # of adjacent steps overlap (a single block fully serializes DMA and compute).
    rows_per_step = -(-R // min_steps)                       # cdiv(R, min_steps)
    t_steps = max(row_mult, -(-rows_per_step // row_mult) * row_mult)
    t = min(t_bytes, t_steps)
    if t >= R:
        # Whole row range fits in one block (legal: block dim equals array dim).
        return R
    return t


def norm_forward(s: jax.Array, alpha: float = 200.0) -> jax.Array:
    """softmax(alpha * s) along the last dim, batched over all leading dims."""
    orig_shape = s.shape
    D = orig_shape[-1]
    R = int(math.prod(orig_shape[:-1])) if len(orig_shape) > 1 else 1
    s2 = s.reshape(R, D)                      # contiguous collapse: metadata only

    itemsize = jnp.dtype(s.dtype).itemsize
    row_mult = {1: 32, 2: 16}.get(itemsize, 8)    # sublane packing per dtype width
    tR = _pick_tile_rows(R, D, itemsize, row_mult)
    grid = (pl.cdiv(R, tR),)                  # ragged last block: OOB rows dropped

    # alpha baked in as a Python float (nothing captured as a traced constant).
    kernel = functools.partial(_norm_kernel, alpha=float(alpha))

    out = pl.pallas_call(
        kernel,
        out_shape=jax.ShapeDtypeStruct((R, D), s.dtype),
        grid_spec=pltpu.PrefetchScalarGridSpec(
            num_scalar_prefetch=0,
            grid=grid,
            in_specs=[pl.BlockSpec((tR, D), lambda i: (i, 0))],
            out_specs=pl.BlockSpec((tR, D), lambda i: (i, 0)),
        ),
        compiler_params=pltpu.CompilerParams(
            dimension_semantics=("parallel",),
            # Explicit scoped-VMEM budget: covers 4 MiB tiles double-buffered on
            # v5e (raises its 16 MiB default) and stays within v6e/v7x defaults.
            vmem_limit_bytes=32 * 1024 * 1024,
        ),
    )(s2)
    return out.reshape(orig_shape)


if __name__ == "__main__":
    key = jax.random.PRNGKey(0)

    # Small shape implied by the module's forward: (batch, seq, hidden).
    B, S, D = 2, 8, 32
    s = jax.random.normal(key, (B, S, D), dtype=jnp.float32)
    out = jax.block_until_ready(norm_forward(s, alpha=200.0))
    ref = jax.nn.softmax(200.0 * s, axis=-1)
    assert out.shape == s.shape and out.dtype == s.dtype
    assert jnp.allclose(out, ref, atol=2e-3, rtol=2e-3), float(jnp.max(jnp.abs(out - ref)))

    # Larger case: exercises the multi-step tiled pipeline.
    B2, S2, D2 = 2, 2048, 512
    s2 = jax.random.normal(jax.random.PRNGKey(1), (B2, S2, D2), dtype=jnp.float32)
    out2 = jax.block_until_ready(norm_forward(s2, alpha=200.0))
    ref2 = jax.nn.softmax(200.0 * s2, axis=-1)
    assert jnp.allclose(out2, ref2, atol=2e-3, rtol=2e-3), float(jnp.max(jnp.abs(out2 - ref2)))

    # Ragged case: row count not divisible by the tile -> OOB rows dropped on store.
    B3, S3, D3 = 3, 5, 32
    s3 = jax.random.normal(jax.random.PRNGKey(2), (B3, S3, D3), dtype=jnp.float32)
    out3 = jax.block_until_ready(norm_forward(s3, alpha=200.0))
    ref3 = jax.nn.softmax(200.0 * s3, axis=-1)
    assert jnp.allclose(out3, ref3, atol=2e-3, rtol=2e-3), float(jnp.max(jnp.abs(out3 - ref3)))

    # bf16 input: internal compute promoted to f32 (large-alpha precision fix).
    s4 = jax.random.normal(jax.random.PRNGKey(3), (2, 32, 64), dtype=jnp.bfloat16)
    out4 = jax.block_until_ready(norm_forward(s4, alpha=200.0))
    ref4 = jax.nn.softmax(200.0 * s4.astype(jnp.float32), axis=-1).astype(jnp.bfloat16)
    assert out4.dtype == jnp.bfloat16
    assert jnp.allclose(
        out4.astype(jnp.float32), ref4.astype(jnp.float32), atol=1e-2, rtol=1e-2
    ), float(jnp.max(jnp.abs(out4.astype(jnp.float32) - ref4.astype(jnp.float32))))

    print("KERNEL_OK")
</pallas_src>

<mosaic_0001>
module attributes {stable_mosaic.version = 11 : i64} {
  func.func @_norm_kernel(%arg0: i32, %arg1: memref<8x32xf32, #tpu.memory_space<vmem>>, %arg2: memref<8x32xf32, #tpu.memory_space<vmem>>) attributes {dimension_semantics = [#tpu.dimension_semantics<parallel>], iteration_bounds = array<i64: 2>, scalar_prefetch = 0 : i64, scratch_operands = 0 : i64, tpu.core_type = #tpu.core_type<tc>, window_params = [{transform_indices = @transform_0, window_bounds = array<i64: 8, 32>}, {transform_indices = @transform_1, window_bounds = array<i64: 8, 32>}]} {
    %c0 = arith.constant 0 : index
    %c0_0 = arith.constant 0 : index
    %0 = vector.load %arg1[%c0, %c0_0] : memref<8x32xf32, #tpu.memory_space<vmem>>, vector<8x32xf32>
    %cst = arith.constant 2.000000e+02 : f32
    %1 = vector.broadcast %cst : f32 to vector<8x32xf32>
    %2 = arith.mulf %1, %0 : vector<8x32xf32>
    %cst_1 = arith.constant dense<0xFF800000> : vector<8xf32>
    %3 = vector.multi_reduction <maximumf>, %2, %cst_1 [1] : vector<8x32xf32> to vector<8xf32>
    %4 = vector.shape_cast %3 : vector<8xf32> to vector<8x1xf32>
    %5 = vector.broadcast %4 : vector<8x1xf32> to vector<8x32xf32>
    %6 = arith.subf %2, %5 : vector<8x32xf32>
    %7 = math.exp %6 : vector<8x32xf32>
    %cst_2 = arith.constant dense<0.000000e+00> : vector<8xf32>
    %8 = vector.multi_reduction <add>, %7, %cst_2 [1] : vector<8x32xf32> to vector<8xf32>
    %9 = vector.shape_cast %8 : vector<8xf32> to vector<8x1xf32>
    %10 = vector.broadcast %9 : vector<8x1xf32> to vector<8x32xf32>
    %11 = arith.divf %7, %10 : vector<8x32xf32>
    %c0_3 = arith.constant 0 : index
    %c0_4 = arith.constant 0 : index
    %12 = vector.load %arg2[%c0_3, %c0_4] : memref<8x32xf32, #tpu.memory_space<vmem>>, vector<8x32xf32>
    tpu.vector_store %arg2[%c0_3, %c0_4], %11 {strides = array<i32>} : memref<8x32xf32, #tpu.memory_space<vmem>>, vector<8x32xf32>,
    return
  }
  func.func @transform_0(%arg0: i32) -> (i32, i32) {
    %c0_i32 = arith.constant 0 : i32
    %c0_i32_0 = arith.constant 0 : i32
    return %arg0, %c0_i32 : i32, i32
  }
  func.func @transform_1(%arg0: i32) -> (i32, i32) {
    %c0_i32 = arith.constant 0 : i32
    %c0_i32_0 = arith.constant 0 : i32
    return %arg0, %c0_i32 : i32, i32
  }
}

</mosaic_0001>

<llo_original>
// kernel: tpu_custom_call.1
$region0: #{tpu_custom_call.1}
  #allocation0 [shape = 'u32[]', space=smem, size = 0x4, offset = 0x4, fixed_abs, tag = 'smem constant byte address 0x4 - core index']
  #allocation1 [shape = 'u32[72,128]{1,0:T(1,128)}', space=vmem, size = 0x9000, scoped, tag = 'internal scratch']
  %s0 = inlined_call_operand.hbm [shape: f32[16,32], index: 0, kind: input, shape index: {}]
  %s1 = inlined_call_operand.hbm [shape: f32[16,32], index: 1, kind: output, shape index: {}]
  %s2 = sld [smem:[#allocation0]]
  $region41: #{tpu_custom_call.1} parent=0
    _
  %s4 = ssub.s32 1, %s2
  %s5 = scalar_select 0, %s4, %s2
  $region1: #{tpu_custom_call.1} parent=0
    #allocation2 [shape = 'u8[8192]{0}', space=vmem, size = 0x2000, scoped, tag = 'input window, operand 0']
    #allocation3 [shape = 's32[2]{0}', space=sflag, size = 0x8, scoped, tag = 'scoped memory for tpu_custom_call.1']
    #allocation4 [shape = 's32[2]{0}', space=sflag, size = 0x8, scoped, tag = 'scoped memory for tpu_custom_call.1']
    #allocation5 [shape = 'u8[8192]{0}', space=vmem, size = 0x2000, scoped, tag = 'output window, operand 0']
    %6 = vsyncpa [#allocation3], 0
    %s7 = scalar_lea.sflag [#allocation3], 1
    %8 = vsyncpa %s7, 0
    %9 = vsyncpa [#allocation4], 0
    %s10 = scalar_lea.sflag [#allocation4], 1
    %11 = vsyncpa %s10, 0
    loop: start=0, step=1, limit=4
    $region2: #{tpu_custom_call.1} parent=1 // loop_pre_header
      _
    $region3: #{tpu_custom_call.1} parent=1 // loop_header
      %s13 = sphi 0, %s17
      %p14 = scmp.ge.s32.totalorder %s13, 4
      %s23 = sphi 0, %s25
      %s26 = sphi 0, %s23
      %s27 = sphi 0, %s26
      %s43 = sphi 0, %s27
      %s49 = sphi 0, %s51
      %s52 = sphi 0, %s49
      %s53 = sphi 0, %s52
      %s69 = sphi 0, %s53
    $region4: #{tpu_custom_call.1} parent=1 // loop_header_branch
      %16 = sbr.rel (%p14) target = $region8
    $region5: #{tpu_custom_call.1} parent=1 // loop_body
      %s18 = ssub.s32 %s13, 1
      %s19 = ssub.s32 %s13, 2
      %s20 = sadd.s32 %s13, 1
      %s21 = ssub.s32 %s13, %s20
      %p22 = scmp.eq.s32.totalorder %s21, 0
      %s24 = sadd.s32 %s23, 1
      %s25 = scalar_select %p22, %s23, %s24
      %p28 = pneg %p22
      %p29 = scmp.eq.s32.totalorder %s13, 1
      %p30 = por %p28, %p29
      %p31 = scmp.ne.s32.totalorder %s23, %s26
      %p32 = scmp.eq.s32.totalorder %s13, 0
      %p33 = por %p31, %p32
      %p34 = scmp.ne.s32.totalorder %s23, %s26
      %p35 = scmp.eq.s32.totalorder %s18, 1
      %p36 = por %p34, %p35
      %p37 = scmp.ne.s32.totalorder %s26, %s27
      %p38 = scmp.eq.s32.totalorder %s18, 0
      %p39 = por %p37, %p38
      %p40 = scmp.ne.s32.totalorder %s26, %s27
      %p41 = scmp.eq.s32.totalorder %s19, 1
      %p42 = por %p40, %p41
      %p44 = scmp.ne.s32.totalorder %s27, %s43
      %p45 = scmp.eq.s32.totalorder %s19, 0
      %p46 = por %p44, %p45
      %s47 = ssub.s32 %s13, %s20
      %p48 = scmp.eq.s32.totalorder %s47, 0
      %s50 = sadd.s32 %s49, 1
      %s51 = scalar_select %p48, %s49, %s50
      %p54 = pneg %p48
      %p55 = scmp.eq.s32.totalorder %s13, 1
      %p56 = por %p54, %p55
      %p57 = scmp.ne.s32.totalorder %s49, %s52
      %p58 = scmp.eq.s32.totalorder %s13, 0
      %p59 = por %p57, %p58
      %p60 = scmp.ne.s32.totalorder %s49, %s52
      %p61 = scmp.eq.s32.totalorder %s18, 1
      %p62 = por %p60, %p61
      %p63 = scmp.ne.s32.totalorder %s52, %s53
      %p64 = scmp.eq.s32.totalorder %s18, 0
      %p65 = por %p63, %p64
      %p66 = scmp.ne.s32.totalorder %s52, %s53
      %p67 = scmp.eq.s32.totalorder %s19, 1
      %p68 = por %p66, %p67
      %p70 = scmp.ne.s32.totalorder %s53, %s69
      %p71 = scmp.eq.s32.totalorder %s19, 0
      %p72 = por %p70, %p71
      %p73 = scmp.le.s32.totalorder 1, %s13
      %p74 = scmp.lt.s32.totalorder %s13, 3
      %p75 = pnand %p73, %p74
      %p76 = pneg %p75
      // Predicated region
      $region9: #{tpu_custom_call.1} parent=5 // pred_check
        _
      $region10: #{tpu_custom_call.1} parent=5 // pred_check_branch
        %78 = sbr.rel (%p75) target = $region12
      $region11: #{tpu_custom_call.1} parent=5 // pred_region
        %s79 = ssub.s32 %s13, 1
      $region12: #{tpu_custom_call.1} parent=5 // pred_fallthru
        _
      %p80 = scmp.lt.s32.totalorder %s13, 2
      // Predicated region
      $region13: #{tpu_custom_call.1} parent=5 // pred_check
        %p81 = pneg %p80
      $region14: #{tpu_custom_call.1} parent=5 // pred_check_branch
        %83 = sbr.rel (%p81) target = $region16
      $region15: #{tpu_custom_call.1} parent=5 // pred_region
        // Predicated region
        $region17: #{tpu_custom_call.1} parent=15 // pred_check
          %p84 = pneg %p33
        $region18: #{tpu_custom_call.1} parent=15 // pred_check_branch
          %86 = sbr.rel (%p84) target = $region20
        $region19: #{tpu_custom_call.1} parent=15 // pred_region
          %s87 = sand.u32 %s23, 1
          %s88 = scalar_lea.sflag [#allocation3], %s87
          %s89 = sand.u32 %s23, 1
          %s90 = smul.addr %s89, 8
          %s91 = scalar_lea.vmem [#allocation2], %s90
          %93 = vsyncadd %s88, 0
          %s94 = smul.addr %s13, 8
          %s95 = scalar_lea.hbm %s0, %s94
          %s97 = sshll.u32 %s95, 4
          %s98 = int_to_ptr.hbm [resolvable:$true] %s97
          %s99 = sshll.u32 %s91, 4
          %s100 = int_to_ptr.vmem [resolvable:$true] %s99
          %102 = dma.hbm_to_vmem [thread:$0]  %s98, 128, %s100, %s88
        $region20: #{tpu_custom_call.1} parent=15 // pred_fallthru
          _
      $region16: #{tpu_custom_call.1} parent=5 // pred_fallthru
        _
      %p103 = scmp.le.s32.totalorder 1, %s13
      %p104 = scmp.lt.s32.totalorder %s13, 3
      %p105 = pnand %p103, %p104
      %p106 = pneg %p105
      // Predicated region
      $region21: #{tpu_custom_call.1} parent=5 // pred_check
        _
      $region22: #{tpu_custom_call.1} parent=5 // pred_check_branch
        %108 = sbr.rel (%p105) target = $region24
      $region23: #{tpu_custom_call.1} parent=5 // pred_region
        %s109 = ssub.s32 %s13, 1
        %s110 = sand.u32 %s26, 1
        %s111 = scalar_lea.sflag [#allocation3], %s110
        %s112 = sand.u32 %s26, 1
        %s113 = smul.addr %s112, 8
        %s114 = scalar_lea.vmem [#allocation2], %s113
        // Predicated region
        $region25: #{tpu_custom_call.1} parent=23 // pred_check
          %p115 = pneg %p39
        $region26: #{tpu_custom_call.1} parent=23 // pred_check_branch
          %117 = sbr.rel (%p115) target = $region28
        $region27: #{tpu_custom_call.1} parent=23 // pred_region
          %119 = dma.done %s111, 128
        $region28: #{tpu_custom_call.1} parent=23 // pred_fallthru
          _
        %s120 = sand.u32 %s26, 1
        %s121 = scalar_lea.sflag [#allocation3], %s120
        %s122 = sand.u32 %s26, 1
        %s123 = smul.addr %s122, 8
        %s124 = scalar_lea.vmem [#allocation2], %s123
        %p125 = pneg %p39
        %p126 = pneg %p36
        %p127 = pneg %p65
        %p128 = pneg %p62
        %s129 = sand.u32 %s52, 1
        %s130 = scalar_lea.sflag [#allocation4], %s129
        %s131 = sand.u32 %s52, 1
        %s132 = smul.addr %s131, 8
        %s133 = scalar_lea.vmem [#allocation5], %s132
        %v134 = vld [vmem:[%s114] sm:$0xff]
        %v135 = vmul.f32 %v134, 200.0
        %vm136 = vcmask 261120
        %v137 = vsel %vm136, %v135, -inf
        %138 = vmax.xlane.f32.xlu0 %v137
        %v139 = vpop.xlane.xlu0 %138
        %v140 = vsub.f32 %v135, %v139
        %v141 = vmul.f32 %v140, 1.442695
        %v142 = vpow.pop %v141
        %v143 = vsel %vm136, %v142, 0.0
        %144 = vadd.xlane.f32.xlu0 %v143
        %v145 = vpop.xlane.xlu0 %144
        %v146 = vrcp.pop %v145
        %v147 = vmul.f32 %v145, %v146
        %v148 = vsub.f32 1.0, %v147
        %v149 = vmul.f32 %v146, %v148
        %v150 = vadd.f32 %v146, %v149
        %vm151 = vweird.f32 %v145
        %vm152 = vweird.f32 %v146
        %vm153 = vmor %vm151, %vm152
        %v154 = vsel %vm153, %v146, %v150
        %v155 = vand.u32 2147483647, %v145
        %vm156 = vcmp.eq.f32.partialorder %v155, 8.507059e+37
        %v157 = vand.u32 %v145, 2147483648
        %v158 = vor.u32 1.1754944e-38, %v157
        %v159 = vsel %vm156, %v158, %v154
        %v160 = vmul.f32 %v142, %v159
        %161 = vst.msk [vmem:[%s133] sm:$0xff] %vm136, %v160
        %s162 = sand.u32 %s52, 1
        %s163 = scalar_lea.sflag [#allocation4], %s162
        %s164 = sand.u32 %s52, 1
        %s165 = smul.addr %s164, 8
        %s166 = scalar_lea.vmem [#allocation5], %s165
        // Predicated region
        $region29: #{tpu_custom_call.1} parent=23 // pred_check
          %p167 = pneg %p62
        $region30: #{tpu_custom_call.1} parent=23 // pred_check_branch
          %169 = sbr.rel (%p167) target = $region32
        $region31: #{tpu_custom_call.1} parent=23 // pred_region
          %171 = vsyncadd %s163, 0
          %s172 = smul.addr %s18, 8
          %s173 = scalar_lea.hbm %s1, %s172
          %s175 = sshll.u32 %s166, 4
          %s176 = int_to_ptr.vmem [resolvable:$true] %s175
          %s177 = sshll.u32 %s173, 4
          %s178 = int_to_ptr.hbm [resolvable:$true] %s177
          %180 = dma.vmem_to_hbm [thread:$0]  %s176, 128, %s178, %s163
        $region32: #{tpu_custom_call.1} parent=23 // pred_fallthru
          _
      $region24: #{tpu_custom_call.1} parent=5 // pred_fallthru
        _
      %p181 = scmp.le.s32.totalorder 2, %s13
      // Predicated region
      $region33: #{tpu_custom_call.1} parent=5 // pred_check
        %p182 = pneg %p181
      $region34: #{tpu_custom_call.1} parent=5 // pred_check_branch
        %184 = sbr.rel (%p182) target = $region36
      $region35: #{tpu_custom_call.1} parent=5 // pred_region
        %s185 = ssub.s32 %s13, 2
        // Predicated region
        $region37: #{tpu_custom_call.1} parent=35 // pred_check
          %p186 = pneg %p68
        $region38: #{tpu_custom_call.1} parent=35 // pred_check_branch
          %188 = sbr.rel (%p186) target = $region40
        $region39: #{tpu_custom_call.1} parent=35 // pred_region
          %s189 = sand.u32 %s53, 1
          %s190 = scalar_lea.sflag [#allocation4], %s189
          %s191 = sand.u32 %s53, 1
          %s192 = smul.addr %s191, 8
          %s193 = scalar_lea.vmem [#allocation5], %s192
          %195 = dma.done %s190, 128
        $region40: #{tpu_custom_call.1} parent=35 // pred_fallthru
          _
      $region36: #{tpu_custom_call.1} parent=5 // pred_fallthru
        _
    $region6: #{tpu_custom_call.1} parent=1 // loop_footer
      %s17 = sadd.s32 1, %s13
    $region7: #{tpu_custom_call.1} parent=1 // loop_footer_branch
      %12 = sbr.rel target = $region3
    $region8: #{tpu_custom_call.1} parent=1 // loop_exit
      _
    %196 = vsyncpa [#allocation3], 1
    %s197 = scalar_lea.sflag [#allocation3], 1
    %198 = vsyncpa %s197, 1
    %199 = vsyncpa [#allocation4], 1
    %s200 = scalar_lea.sflag [#allocation4], 1
    %201 = vsyncpa %s200, 1

</llo_original>
